<compile_context>
chip_gen: v6e
topology: v6e:2x2x1
jax: 0.10.0
libtpu: 0.0.40
codegen_flags: <defaults>
</compile_context>

<pallas_src>
import math
import functools

import jax
import jax.numpy as jnp
from jax import lax
from jax.experimental import pallas as pl
from jax.experimental.pallas import tpu as pltpu


# ----------------------------------------------------------------------------
# Pallas kernel 1: ESGtransform attention with softmax_one, batched over branch
# ----------------------------------------------------------------------------
def _esg_attn_kernel(q_ref, k_ref, v_ref, f_ref, o_ref, *, scale):
    q = q_ref[0] * scale                                   # scale [n,d], not [n,n]
    k = k_ref[0]
    v = v_ref[0]
    # q @ k.T without an explicit transpose (contract last dims).
    s = lax.dot_general(q, k, (((1,), (1,)), ((), ())),
                        preferred_element_type=jnp.float32)          # [n, n]
    m = jnp.max(s, axis=-1, keepdims=True)
    e = jnp.exp(s - m)
    # Matches the torch reference softmax_one exactly: exp(x-m) / (1 + sum(exp(x-m)))
    denom = 1.0 + jnp.sum(e, axis=-1, keepdims=True)
    w = e * pl.reciprocal(denom, approx=True)
    o_ref[0] = jnp.dot(w, v, preferred_element_type=jnp.float32) + f_ref[0]


def esg_attention_batched(q, k, v, feats):
    """q, k, v, feats: [B, n, d] (B = 2 branches).  Returns [B, n, d]."""
    b, n, d = q.shape
    spec = lambda: pl.BlockSpec((1, n, d), lambda i: (i, 0, 0))
    kernel = functools.partial(_esg_attn_kernel, scale=1.0 / math.sqrt(d))
    return pl.pallas_call(
        kernel,
        out_shape=jax.ShapeDtypeStruct((b, n, d), jnp.float32),
        grid=(b,),
        in_specs=[spec(), spec(), spec(), spec()],
        out_specs=spec(),
        compiler_params=pltpu.CompilerParams(dimension_semantics=("parallel",)),
    )(q, k, v, feats)


# ----------------------------------------------------------------------------
# Pallas kernel 2: dense multi-head GAT layer, batched over the two graphs
# ----------------------------------------------------------------------------
def _gat_kernel(feat_ref, w_ref, alr_ref, arb_ref, adj_ref, o_ref,
                *, heads, d_out, slope):
    feat = feat_ref[0]                                              # [N, Fin]
    # Fused per-head projection: one [N,Fin] x [Fin, H*D] matmul.
    wh = jnp.dot(feat, w_ref[...], preferred_element_type=jnp.float32)   # [N, H*D]
    # Per-head dst scores (columns) and src scores (rows) via block-diag matmuls,
    # no in-kernel wh.T.
    er = jnp.dot(wh, arb_ref[...], preferred_element_type=jnp.float32)   # [N, H]
    el = lax.dot_general(alr_ref[...], wh, (((1,), (1,)), ((), ())),
                         preferred_element_type=jnp.float32)             # [H, N]
    # Adjacency mask bias built once per tile (not per head).
    bias = jnp.where(adj_ref[0] > 0.0, 0.0, -1e30)                       # [N, N]
    outs = []
    for h in range(heads):                      # static unroll; heads is small
        e = er[:, h:h + 1] + el[h:h + 1, :]                              # [dst, src]
        e = jnp.where(e > 0, e, slope * e) + bias                        # LeakyReLU + mask
        m = jnp.max(e, axis=-1, keepdims=True)
        p = jnp.exp(e - m)                                               # masked -> 0
        denom = jnp.sum(p, axis=-1, keepdims=True) + 1e-9
        alpha = p * pl.reciprocal(denom, approx=True)
        outs.append(jnp.dot(alpha, wh[:, h * d_out:(h + 1) * d_out],
                            preferred_element_type=jnp.float32))         # [N, D]
    res = jnp.concatenate(outs, axis=-1) if heads > 1 else outs[0]       # [N, H*D]
    o_ref[0] = res                                                       # lane-dense store


def gat_layer_batched(feat, w, al, ar, adj, *, slope=0.2):
    """feat: [B, N, Fin]; w: [H, Fin, D]; al, ar: [H, D]; adj: [B, N, N].
    Returns [B, N, H, D]."""
    b, n, fin = feat.shape
    heads, _, d = w.shape
    hd = heads * d
    # Fused projection matrix and block-diagonal attention-score matrices.
    w2d = jnp.transpose(w, (1, 0, 2)).reshape(fin, hd)       # [Fin, H*D]
    eye = jnp.eye(heads, dtype=w.dtype)
    ar_blk = (ar[:, :, None] * eye[:, None, :]).reshape(hd, heads)   # [H*D, H]
    al_rows = (eye[:, :, None] * al[None, :, :]).reshape(heads, hd)  # [H, H*D]

    kernel = functools.partial(_gat_kernel, heads=heads, d_out=d, slope=slope)
    out = pl.pallas_call(
        kernel,
        out_shape=jax.ShapeDtypeStruct((b, n, hd), jnp.float32),
        grid=(b,),
        in_specs=[
            pl.BlockSpec((1, n, fin), lambda i: (i, 0, 0)),
            pl.BlockSpec((fin, hd), lambda i: (0, 0)),
            pl.BlockSpec((heads, hd), lambda i: (0, 0)),
            pl.BlockSpec((hd, heads), lambda i: (0, 0)),
            pl.BlockSpec((1, n, n), lambda i: (i, 0, 0)),
        ],
        out_specs=pl.BlockSpec((1, n, hd), lambda i: (i, 0, 0)),
        compiler_params=pltpu.CompilerParams(dimension_semantics=("parallel",)),
    )(feat, w2d, al_rows, ar_blk, adj)
    return out.reshape(b, n, heads, d)


# ----------------------------------------------------------------------------
# Pallas kernel 3: loss-matrix head  (out = xs W^T W xd^T, symmetrize, softmax)
# ----------------------------------------------------------------------------
def _loss_head_kernel(xs_ref, xd_ref, w_ref, mask_ref, mat_ref):
    xs = xs_ref[...]
    xd = xd_ref[...]
    w = w_ref[...]
    # a = xs @ W.T, b = xd @ W.T, out = a @ b.T  ==  xs W^T W xd^T  (one fewer matmul,
    # no explicit xd.T; all contractions on the last dims).
    nt = (((1,), (1,)), ((), ()))
    a = lax.dot_general(xs, w, nt, preferred_element_type=jnp.float32)   # [N, D]
    b = lax.dot_general(xd, w, nt, preferred_element_type=jnp.float32)   # [N, D]
    out = lax.dot_general(a, b, nt, preferred_element_type=jnp.float32)  # [N, N]
    out_direct = out + out.T
    # Spec semantics: out[mask] = (out + out.T)[mask]; mask is True everywhere EXCEPT
    # the [:num_directnode, :num_directnode] block (matches the PyTorch reference).
    out = jnp.where(mask_ref[...] > 0, out_direct, out)
    m = jnp.max(out, axis=-1, keepdims=True)
    e = jnp.exp(out - m)
    mat_ref[...] = e * pl.reciprocal(jnp.sum(e, axis=-1, keepdims=True), approx=True)


def loss_head(xs, xd, loss_w, mask_f32):
    n, d = xs.shape
    return pl.pallas_call(
        _loss_head_kernel,
        out_shape=jax.ShapeDtypeStruct((n, n), jnp.float32),
        grid=(1,),
        in_specs=[
            pl.BlockSpec((n, d), lambda i: (0, 0)),
            pl.BlockSpec((n, d), lambda i: (0, 0)),
            pl.BlockSpec((d, d), lambda i: (0, 0)),
            pl.BlockSpec((n, n), lambda i: (0, 0)),
        ],
        out_specs=pl.BlockSpec((n, n), lambda i: (0, 0)),
        compiler_params=pltpu.CompilerParams(dimension_semantics=("arbitrary",)),
    )(xs, xd, loss_w, mask_f32)


# ----------------------------------------------------------------------------
# Plain JAX glue (LayerNorm / LSTM / transformer encoder / batchnorm)
# ----------------------------------------------------------------------------
def layer_norm(x, w, b, eps=1e-5):
    mu = jnp.mean(x, axis=-1, keepdims=True)
    var = jnp.mean((x - mu) ** 2, axis=-1, keepdims=True)
    return (x - mu) / jnp.sqrt(var + eps) * w + b


def batch_norm_eval(x, w, b, eps=1e-5):
    # BatchNorm1d(num_features=heads) on [..., heads, D]; eval mode: mean=0, var=1.
    return (x / math.sqrt(1.0 + eps)) * w[:, None] + b[:, None]


def esg_transform_qkv(p, x, beta0, beta1, beta2):
    """Returns (q, k, v, feats) for one branch of ESGtransform."""
    ESG = jnp.where(x[:, 5:14] <= 0, 1e-10, x[:, 5:14])
    esg = jnp.where(x[:, 14:] <= 0, 1e-10, x[:, 14:])
    feats = layer_norm(x[:, 0:5], p['ln_w'], p['ln_b'])
    k = feats @ p['w_k']
    v = feats @ p['w_v']
    q = beta0 + esg @ beta1 + (ESG * esg) @ beta2
    return q, k, v, feats


def lstm_cell_state(x, p):
    """x: (B, L, In) batch_first; returns final cell state c_L with shape (B, H)."""
    B, L, _ = x.shape
    H = p['Whh'].shape[0]

    def step(carry, xt):
        h, c = carry
        z = xt @ p['Wih'] + h @ p['Whh'] + p['b']
        i, f, g, o = jnp.split(z, 4, axis=-1)
        i = jax.nn.sigmoid(i)
        f = jax.nn.sigmoid(f)
        g = jnp.tanh(g)
        o = jax.nn.sigmoid(o)
        c = f * c + i * g
        h = o * jnp.tanh(c)
        return (h, c), None

    h0 = jnp.zeros((B, H), jnp.float32)
    c0 = jnp.zeros((B, H), jnp.float32)
    (_, c), _ = lax.scan(step, (h0, c0), jnp.swapaxes(x, 0, 1))
    return c


def transformer_encoder_layer(x, p, nhead):
    """Post-norm TransformerEncoderLayer (relu FFN, dropout=identity)."""
    B, L, d = x.shape
    hd = d // nhead
    q = x @ p['wq'] + p['bq']
    k = x @ p['wk'] + p['bk']
    v = x @ p['wv'] + p['bv']

    def split_heads(t):
        return t.reshape(B, L, nhead, hd).transpose(0, 2, 1, 3)

    qh, kh, vh = split_heads(q), split_heads(k), split_heads(v)
    s = jnp.einsum('bhld,bhmd->bhlm', qh, kh) / math.sqrt(hd)
    a = jax.nn.softmax(s, axis=-1)
    ctx = jnp.einsum('bhlm,bhmd->bhld', a, vh).transpose(0, 2, 1, 3).reshape(B, L, d)
    attn_out = ctx @ p['wo'] + p['bo']
    x = layer_norm(x + attn_out, p['ln1_w'], p['ln1_b'])
    ff = jax.nn.relu(x @ p['w1'] + p['b1']) @ p['w2'] + p['b2']
    return layer_norm(x + ff, p['ln2_w'], p['ln2_b'])


# ----------------------------------------------------------------------------
# Full HMG forward
# ----------------------------------------------------------------------------
def hmg_forward(params, args, x_s, x_d, s_edge, d_edge, g_s, g_d, metapath, metaid):
    del s_edge, d_edge  # unused in the reference forward (graph carried by g_s/g_d)

    # ---- AggLSTM / ESGtransform ---- (both branches in one batched Pallas call)
    ep = params['esg']
    q1, k1, v1, f1 = esg_transform_qkv(ep, x_s, ep['beta_q10'], ep['beta_q11'], ep['beta_q12'])
    q2, k2, v2, f2 = esg_transform_qkv(ep, x_d, ep['beta_q20'], ep['beta_q21'], ep['beta_q22'])
    sd = esg_attention_batched(jnp.stack([q1, q2]), jnp.stack([k1, k2]),
                               jnp.stack([v1, v2]), jnp.stack([f1, f2]))
    s, d = sd[0], sd[1]          # softmax_one attention + residual (ablation=False)

    def gather_seq(idx, table):
        vec = table[idx]                                   # (M, P, L, 5)
        return vec, vec.reshape(-1, vec.shape[2], vec.shape[3])

    ps_vec, ps_vect = gather_seq(metapath[0], s)
    is_vec, _ = gather_seq(metapath[2], s)
    pd_vec, pd_vect = gather_seq(metapath[1], d)
    id_vec, id_vect = gather_seq(metapath[3], d)

    lp = params['lstm']
    out_ps = lstm_cell_state(ps_vect, lp)
    # NOTE: the reference code overwrites the `is` LSTM result with the `id` one;
    # we reproduce that bug (the `is` LSTM output is never used).
    out_pd = lstm_cell_state(pd_vect, lp)
    out_id = lstm_cell_state(id_vect, lp)

    input_ps = out_ps.reshape(ps_vec.shape[0], ps_vec.shape[1], -1)
    input_is = out_id.reshape(is_vec.shape[0], is_vec.shape[1], -1)
    input_pd = out_pd.reshape(pd_vec.shape[0], pd_vec.shape[1], -1)
    input_id = out_id.reshape(id_vec.shape[0], id_vec.shape[1], -1)

    # ---- Metapath_attention (dropout = identity in eval mode) ----
    tp = params['trans']
    enc = lambda t: transformer_encoder_layer(t, tp, nhead=5)
    o_ps = jnp.sum(enc(input_ps), axis=1)
    o_is = jnp.sum(enc(input_is), axis=1)
    ft_s = jnp.concatenate([o_ps, o_is], axis=0)
    o_pd = jnp.sum(enc(input_pd), axis=1)
    o_id = jnp.sum(enc(input_id), axis=1)
    ft_d = jnp.concatenate([o_pd, o_id], axis=0)

    # ---- HMG graph part (both graphs in one batched GAT call per layer) ----
    g_s_x = g_s['x'].at[metaid[0], :5].set(ft_s)
    g_d_x = g_d['x'].at[metaid[1], :5].set(ft_d)

    feat0 = jnp.stack([g_s_x[:, :5], g_d_x[:, :5]])        # [2, N, 5]
    adj = jnp.stack([g_s['adj'], g_d['adj']])              # [2, N, N]

    h = gat_layer_batched(feat0, params['gat0_w'], params['gat0_al'],
                          params['gat0_ar'], adj)          # [2, N, H, D]
    h = jax.nn.elu(h)
    h = batch_norm_eval(h, params['bn_w'], params['bn_b']) # channel dim = heads
    # TODO(synk): GATConv is an external (DGL/PyG-like) module; its handling of
    # 3-D per-head features for the second layer is unspecified, so we reduce
    # over heads (mean) before layer 2.
    h2_in = jnp.mean(h, axis=2)                            # [2, N, D]
    h2 = gat_layer_batched(h2_in, params['gat1_w'], params['gat1_al'],
                           params['gat1_ar'], adj)         # [2, N, 1, D]
    h2 = jax.nn.elu(h2)
    # .squeeze(2) in the torch code is a no-op for out_dim > 1
    h2 = h2[:, :min(1139, h2.shape[1])]
    xsd = jnp.mean(h2, axis=2)                             # [2, N, D]
    xs, xd = xsd[0], xsd[1]

    out_matrix = loss_head(xs, xd, params['loss_w'],
                           params['direct_mask'].astype(jnp.float32))
    # y_hat is a trivial matvec: kept in plain JAX (its 1-lane-wide output would
    # force fully-masked stores inside the Pallas kernel).
    y_hat = (xs + xd) @ params['out_w'] + params['out_b']
    return out_matrix, y_hat


# ----------------------------------------------------------------------------
# Deterministic parameter init
# ----------------------------------------------------------------------------
def xavier_normal(key, fan_in, fan_out, shape=None):
    shape = (fan_in, fan_out) if shape is None else shape
    std = math.sqrt(2.0 / (fan_in + fan_out))
    return std * jax.random.normal(key, shape, jnp.float32)


def init_params(key, args):
    ks = iter(jax.random.split(key, 64))
    D, H, N = args['out_dim'], args['head'], args['num_node']
    p = {}
    p['esg'] = {
        'beta_q10': jnp.zeros((1,), jnp.float32),
        'beta_q20': jnp.zeros((1,), jnp.float32),
        'beta_q11': xavier_normal(next(ks), 9, 5),
        'beta_q12': xavier_normal(next(ks), 9, 5),
        'beta_q21': xavier_normal(next(ks), 9, 5),
        'beta_q22': xavier_normal(next(ks), 9, 5),
        'w_k': xavier_normal(next(ks), 5, 5),
        'w_v': xavier_normal(next(ks), 5, 5),
        'ln_w': jnp.ones((5,), jnp.float32),
        'ln_b': jnp.zeros((5,), jnp.float32),
    }
    p['lstm'] = {
        'Wih': 0.2 * jax.random.normal(next(ks), (5, 20), jnp.float32),
        'Whh': 0.2 * jax.random.normal(next(ks), (5, 20), jnp.float32),
        'b': jnp.zeros((20,), jnp.float32),
    }
    p['trans'] = {
        'wq': xavier_normal(next(ks), 5, 5), 'bq': jnp.zeros((5,), jnp.float32),
        'wk': xavier_normal(next(ks), 5, 5), 'bk': jnp.zeros((5,), jnp.float32),
        'wv': xavier_normal(next(ks), 5, 5), 'bv': jnp.zeros((5,), jnp.float32),
        'wo': xavier_normal(next(ks), 5, 5), 'bo': jnp.zeros((5,), jnp.float32),
        'ln1_w': jnp.ones((5,), jnp.float32), 'ln1_b': jnp.zeros((5,), jnp.float32),
        'w1': xavier_normal(next(ks), 5, 2048), 'b1': jnp.zeros((2048,), jnp.float32),
        'w2': xavier_normal(next(ks), 2048, 5), 'b2': jnp.zeros((5,), jnp.float32),
        'ln2_w': jnp.ones((5,), jnp.float32), 'ln2_b': jnp.zeros((5,), jnp.float32),
    }
    p['gat0_w'] = xavier_normal(next(ks), 5, D, shape=(H, 5, D))
    p['gat0_al'] = xavier_normal(next(ks), 1, D, shape=(H, D))
    p['gat0_ar'] = xavier_normal(next(ks), 1, D, shape=(H, D))
    p['gat1_w'] = xavier_normal(next(ks), D, D, shape=(1, D, D))
    p['gat1_al'] = xavier_normal(next(ks), 1, D, shape=(1, D))
    p['gat1_ar'] = xavier_normal(next(ks), 1, D, shape=(1, D))
    p['bn_w'] = jnp.ones((5,), jnp.float32)
    p['bn_b'] = jnp.zeros((5,), jnp.float32)
    p['loss_w'] = jnp.ones((D, D), jnp.float32)
    p['out_w'] = xavier_normal(next(ks), D, 1)
    p['out_b'] = jnp.zeros((1, 1), jnp.float32)
    dmask = jnp.ones((N, N), dtype=bool)
    dmask = dmask.at[:args['num_directnode'], :args['num_directnode']].set(False)
    p['direct_mask'] = dmask
    return p


# ----------------------------------------------------------------------------
# Main
# ----------------------------------------------------------------------------
if __name__ == "__main__":
    args = dict(in_dim=5, out_dim=8, head=5, num_node=16, num_directnode=6,
                ablation=False)

    root = jax.random.PRNGKey(0)
    kp, kx = jax.random.split(root)
    params = init_params(kp, args)
    keys = jax.random.split(kx, 12)

    N_s = N_d = 12
    x_s = jax.random.normal(keys[0], (N_s, 23), jnp.float32)   # [5 feat | 9 ESG | 9 esg]
    x_d = jax.random.normal(keys[1], (N_d, 23), jnp.float32)

    # metapath index tensors (M, P, L): [ps, pd, is, id]
    mp_ps = jax.random.randint(keys[2], (3, 4, 6), 0, N_s)
    mp_pd = jax.random.randint(keys[3], (3, 4, 6), 0, N_d)
    mp_is = jax.random.randint(keys[4], (3, 4, 6), 0, N_s)
    mp_id = jax.random.randint(keys[5], (3, 4, 6), 0, N_d)
    metapath = (mp_ps, mp_pd, mp_is, mp_id)

    metaid = (jax.random.permutation(keys[6], args['num_node'])[:6],
              jax.random.permutation(keys[7], args['num_node'])[:6])

    # graphs: node features [num_node, 5] + dense symmetric adjacency with self-loops
    def make_adj(k, n):
        a = (jax.random.uniform(k, (n, n)) < 0.3).astype(jnp.float32)
        a = jnp.maximum(a, a.T)
        return jnp.maximum(a, jnp.eye(n, dtype=jnp.float32))

    g_s = dict(x=jax.random.normal(keys[8], (args['num_node'], 5), jnp.float32),
               adj=make_adj(keys[10], args['num_node']))
    g_d = dict(x=jax.random.normal(keys[9], (args['num_node'], 5), jnp.float32),
               adj=make_adj(keys[11], args['num_node']))
    s_edge = d_edge = None   # unused by the reference forward

    out_matrix, y_hat = hmg_forward(params, args, x_s, x_d, s_edge, d_edge,
                                    g_s, g_d, metapath, metaid)
    out_matrix = jax.block_until_ready(out_matrix)
    y_hat = jax.block_until_ready(y_hat)

    assert out_matrix.shape == (args['num_node'], args['num_node'])
    assert y_hat.shape == (args['num_node'], 1)
    assert bool(jnp.all(jnp.isfinite(out_matrix))) and bool(jnp.all(jnp.isfinite(y_hat)))
    print("KERNEL_OK")
</pallas_src>

<mosaic_0001>
module attributes {stable_mosaic.version = 11 : i64} {
  func.func @_esg_attn_kernel(%arg0: i32, %arg1: memref<1x12x5xf32, #tpu.memory_space<vmem>>, %arg2: memref<1x12x5xf32, #tpu.memory_space<vmem>>, %arg3: memref<1x12x5xf32, #tpu.memory_space<vmem>>, %arg4: memref<1x12x5xf32, #tpu.memory_space<vmem>>, %arg5: memref<1x12x5xf32, #tpu.memory_space<vmem>>) attributes {dimension_semantics = [#tpu.dimension_semantics<parallel>], iteration_bounds = array<i64: 2>, scalar_prefetch = 0 : i64, scratch_operands = 0 : i64, tpu.core_type = #tpu.core_type<tc>, window_params = [{transform_indices = @transform_0, window_bounds = array<i64: 1, 12, 5>}, {transform_indices = @transform_1, window_bounds = array<i64: 1, 12, 5>}, {transform_indices = @transform_2, window_bounds = array<i64: 1, 12, 5>}, {transform_indices = @transform_3, window_bounds = array<i64: 1, 12, 5>}, {transform_indices = @transform_4, window_bounds = array<i64: 1, 12, 5>}]} {
    %c0 = arith.constant 0 : index
    %c0_0 = arith.constant 0 : index
    %c0_1 = arith.constant 0 : index
    %0 = vector.load %arg1[%c0, %c0_0, %c0_1] : memref<1x12x5xf32, #tpu.memory_space<vmem>>, vector<1x12x5xf32>
    %1 = vector.shape_cast %0 : vector<1x12x5xf32> to vector<12x5xf32>
    %cst = arith.constant 0.44721359 : f32
    %2 = vector.broadcast %cst : f32 to vector<12x5xf32>
    %3 = arith.mulf %1, %2 : vector<12x5xf32>
    %c0_2 = arith.constant 0 : index
    %c0_3 = arith.constant 0 : index
    %c0_4 = arith.constant 0 : index
    %4 = vector.load %arg2[%c0_2, %c0_3, %c0_4] : memref<1x12x5xf32, #tpu.memory_space<vmem>>, vector<1x12x5xf32>
    %5 = vector.shape_cast %4 : vector<1x12x5xf32> to vector<12x5xf32>
    %c0_5 = arith.constant 0 : index
    %c0_6 = arith.constant 0 : index
    %c0_7 = arith.constant 0 : index
    %6 = vector.load %arg3[%c0_5, %c0_6, %c0_7] : memref<1x12x5xf32, #tpu.memory_space<vmem>>, vector<1x12x5xf32>
    %7 = vector.shape_cast %6 : vector<1x12x5xf32> to vector<12x5xf32>
    %cst_8 = arith.constant dense<0.000000e+00> : vector<12x12xf32>
    %8 = tpu.matmul %3, %5, %cst_8 {dimension_numbers = #tpu.dot_dimension_numbers<[1], [1], [0], [0], [0, 0, 1, 0], [], []>} : vector<12x5xf32>, vector<12x5xf32>, vector<12x12xf32> -> vector<12x12xf32>
    %cst_9 = arith.constant dense<0xFF800000> : vector<12xf32>
    %9 = vector.multi_reduction <maximumf>, %8, %cst_9 [1] : vector<12x12xf32> to vector<12xf32>
    %10 = vector.shape_cast %9 : vector<12xf32> to vector<12x1xf32>
    %11 = vector.broadcast %10 : vector<12x1xf32> to vector<12x12xf32>
    %12 = arith.subf %8, %11 : vector<12x12xf32>
    %13 = math.exp %12 : vector<12x12xf32>
    %cst_10 = arith.constant dense<0.000000e+00> : vector<12xf32>
    %14 = vector.multi_reduction <add>, %13, %cst_10 [1] : vector<12x12xf32> to vector<12xf32>
    %15 = vector.shape_cast %14 : vector<12xf32> to vector<12x1xf32>
    %cst_11 = arith.constant 1.000000e+00 : f32
    %16 = vector.broadcast %cst_11 : f32 to vector<12x1xf32>
    %17 = arith.addf %16, %15 : vector<12x1xf32>
    %18 = tpu.reciprocal %17 {approx = true} : vector<12x1xf32> -> vector<12x1xf32>
    %19 = vector.broadcast %18 : vector<12x1xf32> to vector<12x12xf32>
    %20 = arith.mulf %13, %19 : vector<12x12xf32>
    %cst_12 = arith.constant dense<0.000000e+00> : vector<12x5xf32>
    %21 = tpu.matmul %20, %7, %cst_12 {dimension_numbers = #tpu.dot_dimension_numbers<[1], [0], [0], [1], [0, 0, 1, 1], [], []>} : vector<12x12xf32>, vector<12x5xf32>, vector<12x5xf32> -> vector<12x5xf32>
    %c0_13 = arith.constant 0 : index
    %c0_14 = arith.constant 0 : index
    %c0_15 = arith.constant 0 : index
    %22 = vector.load %arg4[%c0_13, %c0_14, %c0_15] : memref<1x12x5xf32, #tpu.memory_space<vmem>>, vector<1x12x5xf32>
    %23 = vector.shape_cast %22 : vector<1x12x5xf32> to vector<12x5xf32>
    %24 = arith.addf %21, %23 : vector<12x5xf32>
    %c0_16 = arith.constant 0 : index
    %c0_17 = arith.constant 0 : index
    %c0_18 = arith.constant 0 : index
    %25 = vector.load %arg5[%c0_16, %c0_17, %c0_18] : memref<1x12x5xf32, #tpu.memory_space<vmem>>, vector<1x12x5xf32>
    %26 = vector.shape_cast %25 : vector<1x12x5xf32> to vector<12x5xf32>
    %27 = vector.shape_cast %24 : vector<12x5xf32> to vector<1x12x5xf32>
    tpu.vector_store %arg5[%c0_16, %c0_17, %c0_18], %27 {strides = array<i32>} : memref<1x12x5xf32, #tpu.memory_space<vmem>>, vector<1x12x5xf32>,
    return
  }
  func.func @transform_0(%arg0: i32) -> (i32, i32, i32) {
    %c0_i32 = arith.constant 0 : i32
    %c0_i32_0 = arith.constant 0 : i32
    %c0_i32_1 = arith.constant 0 : i32
    return %arg0, %c0_i32, %c0_i32_0 : i32, i32, i32
  }
  func.func @transform_1(%arg0: i32) -> (i32, i32, i32) {
    %c0_i32 = arith.constant 0 : i32
    %c0_i32_0 = arith.constant 0 : i32
    %c0_i32_1 = arith.constant 0 : i32
    return %arg0, %c0_i32, %c0_i32_0 : i32, i32, i32
  }
  func.func @transform_2(%arg0: i32) -> (i32, i32, i32) {
    %c0_i32 = arith.constant 0 : i32
    %c0_i32_0 = arith.constant 0 : i32
    %c0_i32_1 = arith.constant 0 : i32
    return %arg0, %c0_i32, %c0_i32_0 : i32, i32, i32
  }
  func.func @transform_3(%arg0: i32) -> (i32, i32, i32) {
    %c0_i32 = arith.constant 0 : i32
    %c0_i32_0 = arith.constant 0 : i32
    %c0_i32_1 = arith.constant 0 : i32
    return %arg0, %c0_i32, %c0_i32_0 : i32, i32, i32
  }
  func.func @transform_4(%arg0: i32) -> (i32, i32, i32) {
    %c0_i32 = arith.constant 0 : i32
    %c0_i32_0 = arith.constant 0 : i32
    %c0_i32_1 = arith.constant 0 : i32
    return %arg0, %c0_i32, %c0_i32_0 : i32, i32, i32
  }
}

</mosaic_0001>

<llo_original>
// kernel: tpu_custom_call.1
$region0: #{tpu_custom_call.1}
  #allocation0 [shape = 'u32[]', space=smem, size = 0x4, offset = 0x4, fixed_abs, tag = 'smem constant byte address 0x4 - core index']
  #allocation1 [shape = 'u32[144,128]{1,0:T(1,128)}', space=vmem, size = 0x12000, scoped, tag = 'internal scratch']
  %s0 = inlined_call_operand.vmem [shape: f32[2,12,5], index: 0, kind: input, shape index: {}]
  %s1 = inlined_call_operand.vmem [shape: f32[2,12,5], index: 1, kind: input, shape index: {}]
  %s2 = inlined_call_operand.vmem [shape: f32[2,12,5], index: 2, kind: input, shape index: {}]
  %s3 = inlined_call_operand.vmem [shape: f32[2,12,5], index: 3, kind: input, shape index: {}]
  %s4 = inlined_call_operand.vmem [shape: f32[2,12,5], index: 4, kind: output, shape index: {}]
  %s5 = sld [smem:[#allocation0]]
  $region49: #{tpu_custom_call.1} parent=0
    _
  %s7 = ssub.s32 1, %s5
  %s8 = scalar_select 0, %s7, %s5
  loop: start=0, step=1, limit=4
  $region2: #{tpu_custom_call.1} parent=0 // loop_pre_header
    _
  $region3: #{tpu_custom_call.1} parent=0 // loop_header
    %s10 = sphi 0, %s14
    %p11 = scmp.ge.s32.totalorder %s10, 4
    %s20 = sphi 0, %s22
    %s23 = sphi 0, %s20
    %s24 = sphi 0, %s23
    %s40 = sphi 0, %s24
    %s46 = sphi 0, %s48
    %s49 = sphi 0, %s46
    %s50 = sphi 0, %s49
    %s66 = sphi 0, %s50
    %s72 = sphi 0, %s74
    %s75 = sphi 0, %s72
    %s76 = sphi 0, %s75
    %s92 = sphi 0, %s76
    %s98 = sphi 0, %s100
    %s101 = sphi 0, %s98
    %s102 = sphi 0, %s101
    %s118 = sphi 0, %s102
    %s124 = sphi 0, %s126
    %s127 = sphi 0, %s124
    %s128 = sphi 0, %s127
    %s144 = sphi 0, %s128
  $region4: #{tpu_custom_call.1} parent=0 // loop_header_branch
    %13 = sbr.rel (%p11) target = $region8
  $region5: #{tpu_custom_call.1} parent=0 // loop_body
    %s15 = ssub.s32 %s10, 1
    %s16 = ssub.s32 %s10, 2
    %s17 = sadd.s32 %s10, 1
    %s18 = ssub.s32 %s10, %s17
    %p19 = scmp.eq.s32.totalorder %s18, 0
    %s21 = sadd.s32 %s20, 1
    %s22 = scalar_select %p19, %s20, %s21
    %p25 = pneg %p19
    %p26 = scmp.eq.s32.totalorder %s10, 1
    %p27 = por %p25, %p26
    %p28 = scmp.ne.s32.totalorder %s20, %s23
    %p29 = scmp.eq.s32.totalorder %s10, 0
    %p30 = por %p28, %p29
    %p31 = scmp.ne.s32.totalorder %s20, %s23
    %p32 = scmp.eq.s32.totalorder %s15, 1
    %p33 = por %p31, %p32
    %p34 = scmp.ne.s32.totalorder %s23, %s24
    %p35 = scmp.eq.s32.totalorder %s15, 0
    %p36 = por %p34, %p35
    %p37 = scmp.ne.s32.totalorder %s23, %s24
    %p38 = scmp.eq.s32.totalorder %s16, 1
    %p39 = por %p37, %p38
    %p41 = scmp.ne.s32.totalorder %s24, %s40
    %p42 = scmp.eq.s32.totalorder %s16, 0
    %p43 = por %p41, %p42
    %s44 = ssub.s32 %s10, %s17
    %p45 = scmp.eq.s32.totalorder %s44, 0
    %s47 = sadd.s32 %s46, 1
    %s48 = scalar_select %p45, %s46, %s47
    %p51 = pneg %p45
    %p52 = scmp.eq.s32.totalorder %s10, 1
    %p53 = por %p51, %p52
    %p54 = scmp.ne.s32.totalorder %s46, %s49
    %p55 = scmp.eq.s32.totalorder %s10, 0
    %p56 = por %p54, %p55
    %p57 = scmp.ne.s32.totalorder %s46, %s49
    %p58 = scmp.eq.s32.totalorder %s15, 1
    %p59 = por %p57, %p58
    %p60 = scmp.ne.s32.totalorder %s49, %s50
    %p61 = scmp.eq.s32.totalorder %s15, 0
    %p62 = por %p60, %p61
    %p63 = scmp.ne.s32.totalorder %s49, %s50
    %p64 = scmp.eq.s32.totalorder %s16, 1
    %p65 = por %p63, %p64
    %p67 = scmp.ne.s32.totalorder %s50, %s66
    %p68 = scmp.eq.s32.totalorder %s16, 0
    %p69 = por %p67, %p68
    %s70 = ssub.s32 %s10, %s17
    %p71 = scmp.eq.s32.totalorder %s70, 0
    %s73 = sadd.s32 %s72, 1
    %s74 = scalar_select %p71, %s72, %s73
    %p77 = pneg %p71
    %p78 = scmp.eq.s32.totalorder %s10, 1
    %p79 = por %p77, %p78
    %p80 = scmp.ne.s32.totalorder %s72, %s75
    %p81 = scmp.eq.s32.totalorder %s10, 0
    %p82 = por %p80, %p81
    %p83 = scmp.ne.s32.totalorder %s72, %s75
    %p84 = scmp.eq.s32.totalorder %s15, 1
    %p85 = por %p83, %p84
    %p86 = scmp.ne.s32.totalorder %s75, %s76
    %p87 = scmp.eq.s32.totalorder %s15, 0
    %p88 = por %p86, %p87
    %p89 = scmp.ne.s32.totalorder %s75, %s76
    %p90 = scmp.eq.s32.totalorder %s16, 1
    %p91 = por %p89, %p90
    %p93 = scmp.ne.s32.totalorder %s76, %s92
    %p94 = scmp.eq.s32.totalorder %s16, 0
    %p95 = por %p93, %p94
    %s96 = ssub.s32 %s10, %s17
    %p97 = scmp.eq.s32.totalorder %s96, 0
    %s99 = sadd.s32 %s98, 1
    %s100 = scalar_select %p97, %s98, %s99
    %p103 = pneg %p97
    %p104 = scmp.eq.s32.totalorder %s10, 1
    %p105 = por %p103, %p104
    %p106 = scmp.ne.s32.totalorder %s98, %s101
    %p107 = scmp.eq.s32.totalorder %s10, 0
    %p108 = por %p106, %p107
    %p109 = scmp.ne.s32.totalorder %s98, %s101
    %p110 = scmp.eq.s32.totalorder %s15, 1
    %p111 = por %p109, %p110
    %p112 = scmp.ne.s32.totalorder %s101, %s102
    %p113 = scmp.eq.s32.totalorder %s15, 0
    %p114 = por %p112, %p113
    %p115 = scmp.ne.s32.totalorder %s101, %s102
    %p116 = scmp.eq.s32.totalorder %s16, 1
    %p117 = por %p115, %p116
    %p119 = scmp.ne.s32.totalorder %s102, %s118
    %p120 = scmp.eq.s32.totalorder %s16, 0
    %p121 = por %p119, %p120
    %s122 = ssub.s32 %s10, %s17
    %p123 = scmp.eq.s32.totalorder %s122, 0
    %s125 = sadd.s32 %s124, 1
    %s126 = scalar_select %p123, %s124, %s125
    %p129 = pneg %p123
    %p130 = scmp.eq.s32.totalorder %s10, 1
    %p131 = por %p129, %p130
    %p132 = scmp.ne.s32.totalorder %s124, %s127
    %p133 = scmp.eq.s32.totalorder %s10, 0
    %p134 = por %p132, %p133
    %p135 = scmp.ne.s32.totalorder %s124, %s127
    %p136 = scmp.eq.s32.totalorder %s15, 1
    %p137 = por %p135, %p136
    %p138 = scmp.ne.s32.totalorder %s127, %s128
    %p139 = scmp.eq.s32.totalorder %s15, 0
    %p140 = por %p138, %p139
    %p141 = scmp.ne.s32.totalorder %s127, %s128
    %p142 = scmp.eq.s32.totalorder %s16, 1
    %p143 = por %p141, %p142
    %p145 = scmp.ne.s32.totalorder %s128, %s144
    %p146 = scmp.eq.s32.totalorder %s16, 0
    %p147 = por %p145, %p146
    %p148 = scmp.le.s32.totalorder 1, %s10
    %p149 = scmp.lt.s32.totalorder %s10, 3
    %p150 = pnand %p148, %p149
    %p151 = pneg %p150
    // Predicated region
    $region9: #{tpu_custom_call.1} parent=5 // pred_check
      _
    $region10: #{tpu_custom_call.1} parent=5 // pred_check_branch
      %153 = sbr.rel (%p150) target = $region12
    $region11: #{tpu_custom_call.1} parent=5 // pred_region
      %s154 = ssub.s32 %s10, 1
    $region12: #{tpu_custom_call.1} parent=5 // pred_fallthru
      _
    %p155 = scmp.lt.s32.totalorder %s10, 2
    // Predicated region
    $region13: #{tpu_custom_call.1} parent=5 // pred_check
      %p156 = pneg %p155
    $region14: #{tpu_custom_call.1} parent=5 // pred_check_branch
      %158 = sbr.rel (%p156) target = $region16
    $region15: #{tpu_custom_call.1} parent=5 // pred_region
      // Predicated region
      $region17: #{tpu_custom_call.1} parent=15 // pred_check
        %p159 = pneg %p30
      $region18: #{tpu_custom_call.1} parent=15 // pred_check_branch
        %161 = sbr.rel (%p159) target = $region20
      $region19: #{tpu_custom_call.1} parent=15 // pred_region
        %p162 = scmp.lt.s32.totalorder %s10, 1
        %s163 = scalar_select %p162, %s10, 1
        %s164 = smul.addr %s163, 2
        %s165 = smul.addr %s164, 8
        %s166 = scalar_lea.vmem %s0, %s165
      $region20: #{tpu_custom_call.1} parent=15 // pred_fallthru
        _
      // Predicated region
      $region21: #{tpu_custom_call.1} parent=15 // pred_check
        %p167 = pneg %p56
      $region22: #{tpu_custom_call.1} parent=15 // pred_check_branch
        %169 = sbr.rel (%p167) target = $region24
      $region23: #{tpu_custom_call.1} parent=15 // pred_region
        %p170 = scmp.lt.s32.totalorder %s10, 1
        %s171 = scalar_select %p170, %s10, 1
        %s172 = smul.addr %s171, 2
        %s173 = smul.addr %s172, 8
        %s174 = scalar_lea.vmem %s1, %s173
      $region24: #{tpu_custom_call.1} parent=15 // pred_fallthru
        _
      // Predicated region
      $region25: #{tpu_custom_call.1} parent=15 // pred_check
        %p175 = pneg %p82
      $region26: #{tpu_custom_call.1} parent=15 // pred_check_branch
        %177 = sbr.rel (%p175) target = $region28
      $region27: #{tpu_custom_call.1} parent=15 // pred_region
        %p178 = scmp.lt.s32.totalorder %s10, 1
        %s179 = scalar_select %p178, %s10, 1
        %s180 = smul.addr %s179, 2
        %s181 = smul.addr %s180, 8
        %s182 = scalar_lea.vmem %s2, %s181
      $region28: #{tpu_custom_call.1} parent=15 // pred_fallthru
        _
      // Predicated region
      $region29: #{tpu_custom_call.1} parent=15 // pred_check
        %p183 = pneg %p108
      $region30: #{tpu_custom_call.1} parent=15 // pred_check_branch
        %185 = sbr.rel (%p183) target = $region32
      $region31: #{tpu_custom_call.1} parent=15 // pred_region
        %p186 = scmp.lt.s32.totalorder %s10, 1
        %s187 = scalar_select %p186, %s10, 1
        %s188 = smul.addr %s187, 2
        %s189 = smul.addr %s188, 8
        %s190 = scalar_lea.vmem %s3, %s189
      $region32: #{tpu_custom_call.1} parent=15 // pred_fallthru
        _
    $region16: #{tpu_custom_call.1} parent=5 // pred_fallthru
      _
    %p191 = scmp.le.s32.totalorder 1, %s10
    %p192 = scmp.lt.s32.totalorder %s10, 3
    %p193 = pnand %p191, %p192
    %p194 = pneg %p193
    // Predicated region
    $region33: #{tpu_custom_call.1} parent=5 // pred_check
      _
    $region34: #{tpu_custom_call.1} parent=5 // pred_check_branch
      %196 = sbr.rel (%p193) target = $region36
    $region35: #{tpu_custom_call.1} parent=5 // pred_region
      %s197 = ssub.s32 %s10, 1
      %p198 = scmp.lt.s32.totalorder %s15, 1
      %s199 = scalar_select %p198, %s15, 1
      %s200 = smul.addr %s199, 2
      %s201 = smul.addr %s200, 8
      %s202 = scalar_lea.vmem %s0, %s201
      %p203 = pneg %p36
      %p204 = pneg %p33
      %p205 = scmp.lt.s32.totalorder %s15, 1
      %s206 = scalar_select %p205, %s15, 1
      %s207 = smul.addr %s206, 2
      %s208 = smul.addr %s207, 8
      %s209 = scalar_lea.vmem %s1, %s208
      %p210 = pneg %p62
      %p211 = pneg %p59
      %p212 = scmp.lt.s32.totalorder %s15, 1
      %s213 = scalar_select %p212, %s15, 1
      %s214 = smul.addr %s213, 2
      %s215 = smul.addr %s214, 8
      %s216 = scalar_lea.vmem %s2, %s215
      %p217 = pneg %p88
      %p218 = pneg %p85
      %p219 = scmp.lt.s32.totalorder %s15, 1
      %s220 = scalar_select %p219, %s15, 1
      %s221 = smul.addr %s220, 2
      %s222 = smul.addr %s221, 8
      %s223 = scalar_lea.vmem %s3, %s222
      %p224 = pneg %p114
      %p225 = pneg %p111
      %p226 = pneg %p140
      %p227 = pneg %p137
      %p228 = scmp.lt.s32.totalorder %s15, 1
      %s229 = scalar_select %p228, %s15, 1
      %s230 = smul.addr %s229, 2
      %s231 = smul.addr %s230, 8
      %s232 = scalar_lea.vmem %s4, %s231
      %p233 = scmp.lt.s32.totalorder %s15, 1
      %s234 = scalar_select %p233, %s15, 1
      %s235 = smul.addr %s234, 2
      %s236 = smul.addr %s235, 8
      %s237 = scalar_lea.vmem %s0, %s236
      %p238 = scmp.lt.s32.totalorder %s15, 1
      %s239 = scalar_select %p238, %s15, 1
      %s240 = smul.addr %s239, 2
      %s241 = smul.addr %s240, 8
      %s242 = scalar_lea.vmem %s1, %s241
      %p243 = scmp.lt.s32.totalorder %s15, 1
      %s244 = scalar_select %p243, %s15, 1
      %s245 = smul.addr %s244, 2
      %s246 = smul.addr %s245, 8
      %s247 = scalar_lea.vmem %s2, %s246
      %p248 = scmp.lt.s32.totalorder %s15, 1
      %s249 = scalar_select %p248, %s15, 1
      %s250 = smul.addr %s249, 2
      %s251 = smul.addr %s250, 8
      %s252 = scalar_lea.vmem %s3, %s251
      %p253 = scmp.lt.s32.totalorder %s15, 1
      %s254 = scalar_select %p253, %s15, 1
      %s255 = smul.addr %s254, 2
      %s256 = smul.addr %s255, 8
      %s257 = scalar_lea.vmem %s4, %s256
      %v258 = vld [vmem:[%s237] sm:$0xff]
      %v259 = vld [vmem:[%s237 + $0x8] sm:$0xf]
      %v260 = vmul.f32 %v258, 0.4472136
      %v261 = vmul.f32 %v259, 0.4472136
      %v262 = vld [vmem:[%s242] sm:$0xff]
      %v263 = vld [vmem:[%s242 + $0x8] sm:$0xf]
      %v264 = vld [vmem:[%s247] sm:$0xff]
      %v265 = vld [vmem:[%s247 + $0x8] sm:$0xf]
      %vm266 = vcmask 39936
      %v268 = vsel %vm266, %v260, 0
      %v271 = vsel %vm266, %v261, 0
      %v274 = vsel %vm266, %v262, 0
      %v277 = vsel %vm266, %v263, 0
      %279 = vmatprep.subr.mxu0 0.0
      %280 = vmatpush1.xpose.msra.mxu0 0.0
      %281 = vmatprep.subr.mxu0 0.0
      %282 = vmatpush1.xpose.msra.mxu0 0.0
      %283 = vmatprep.subr.mxu0 0.0
      %284 = vmatpush1.xpose.msra.mxu0 0.0
      %285 = vmatprep.subr.mxu0 0.0
      %286 = vmatpush1.xpose.msra.mxu0 0.0
      %287 = vmatprep.subr.mxu0 0.0
      %288 = vmatpush1.xpose.msra.mxu0 0.0
      %289 = vmatprep.subr.mxu0 0.0
      %290 = vmatpush1.xpose.msra.mxu0 0.0
      %291 = vmatprep.subr.mxu0 0.0
      %292 = vmatpush1.xpose.msra.mxu0 0.0
      %293 = vmatprep.subr.mxu0 0.0
      %294 = vmatpush1.xpose.msra.mxu0 0.0
      %295 = vmatprep.subr.mxu0 0.0
      %296 = vmatpush1.xpose.msra.mxu0 0.0
      %297 = vmatprep.subr.mxu0 0.0
      %298 = vmatpush1.xpose.msra.mxu0 0.0
      %299 = vmatprep.subr.mxu0 0.0
      %300 = vmatpush1.xpose.msra.mxu0 0.0
      %301 = vmatprep.subr.mxu0 0.0
      %302 = vmatpush1.xpose.msra.mxu0 0.0
      %303 = vmatprep.subr.mxu0 0.0
      %304 = vmatpush1.xpose.msra.mxu0 0.0
      %305 = vmatprep.subr.mxu0 0.0
      %306 = vmatpush1.xpose.msra.mxu0 0.0
      %307 = vmatprep.subr.mxu0 0.0
      %308 = vmatpush1.xpose.msra.mxu0 %v277
      %309 = vmatprep.subr.mxu0 0.0
      %310 = vmatpush1.xpose.msra.mxu0 %v274
      %311 = vmatprep.subr.mxu0 0.0
      %312 = vmatpush2.xpose.msra.mxu0 0.0
      %313 = vmatprep.subr.mxu0 0.0
      %314 = vmatpush2.xpose.msra.mxu0 0.0
      %315 = vmatprep.subr.mxu0 0.0
      %316 = vmatpush2.xpose.msra.mxu0 0.0
      %317 = vmatprep.subr.mxu0 0.0
      %318 = vmatpush2.xpose.msra.mxu0 0.0
      %319 = vmatprep.subr.mxu0 0.0
      %320 = vmatpush2.xpose.msra.mxu0 0.0
      %321 = vmatprep.subr.mxu0 0.0
      %322 = vmatpush2.xpose.msra.mxu0 0.0
      %323 = vmatprep.subr.mxu0 0.0
      %324 = vmatpush2.xpose.msra.mxu0 0.0
      %325 = vmatprep.subr.mxu0 0.0
      %326 = vmatpush2.xpose.msra.mxu0 0.0
      %327 = vmatprep.subr.mxu0 0.0
      %328 = vmatpush2.xpose.msra.mxu0 0.0
      %329 = vmatprep.subr.mxu0 0.0
      %330 = vmatpush2.xpose.msra.mxu0 0.0
      %331 = vmatprep.subr.mxu0 0.0
      %332 = vmatpush2.xpose.msra.mxu0 0.0
      %333 = vmatprep.subr.mxu0 0.0
      %334 = vmatpush2.xpose.msra.mxu0 0.0
      %335 = vmatprep.subr.mxu0 0.0
      %336 = vmatpush2.xpose.msra.mxu0 0.0
      %337 = vmatprep.subr.mxu0 0.0
      %338 = vmatpush2.xpose.msra.mxu0 0.0
      %339 = vmatprep.subr.mxu0 0.0
      %340 = vmatpush2.xpose.msra.mxu0 0.0
      %341 = vmatprep.subr.mxu0 0.0
      %342 = vmatpush2.xpose.msra.mxu0 0.0
      %343 = vmatprep.mubr.f32.mxu0 0.0
      %344 = vmatmul.mubr.f32.gmra.mxu0 %v268
      %v345 = vpop.f32.mrf.mxu0
      %v346 = vadd.f32 0.0, %v345
      %v347 = vpop.f32.mrf.mxu0
      %348 = vmatprep.mubr.f32.mxu0 0.0
      %349 = vmatmul.mubr.f32.gmra.mxu0 %v271
      %v350 = vpop.f32.mrf.mxu0
      %v351 = vadd.f32 0.0, %v350
      %v352 = vpop.f32.mrf.mxu0
      %353 = vdwg.mxu0
      %vm354 = vcmask 97280
      %v355 = vsel %vm354, %v346, -inf
      %356 = vmax.xlane.f32.xlu0 %v355
      %v357 = vpop.xlane.xlu0 %356
      %vm358 = vcmask 93184
      %v359 = vsel %vm358, %v351, -inf
      %360 = vmax.xlane.f32.xlu0 %v359
      %v361 = vpop.xlane.xlu0 %360
      %v362 = vsub.f32 %v346, %v357
      %v363 = vsub.f32 %v351, %v361
      %v364 = vmul.f32 %v362, 1.442695
      %v365 = vpow.pop %v364
      %v366 = vmul.f32 %v363, 1.442695
      %v367 = vpow.pop %v366
      %v368 = vsel %vm354, %v365, 0.0
      %369 = vadd.xlane.f32.xlu0 %v368
      %v370 = vpop.xlane.xlu0 %369
      %v371 = vsel %vm358, %v367, 0.0
      %372 = vadd.xlane.f32.xlu0 %v371
      %v373 = vpop.xlane.xlu0 %372
      %v374 = vadd.f32 %v370, 1.0
      %v375 = vadd.f32 %v373, 1.0
      %v376 = vrcp.pop %v374
      %v377 = vrcp.pop %v375
      %v378 = vmul.f32 %v365, %v376
      %v379 = vmul.f32 %v367, %v377
      %v380 = vld [vmem:[%s252] sm:$0xff]
      %v381 = vld [vmem:[%s252 + $0x8] sm:$0xf]
      %v383 = vsel %vm354, %v378, 0
      %v386 = vsel %vm354, %v379, 0
      %vm388 = vcmask 1043456
      %v390 = vsel %vm388, %v265, 0
      %392 = vmatprep.subr.mxu0 0.0
      %393 = vmatpush1.msra.mxu0 0.0
      %394 = vmatprep.subr.mxu0 0.0
      %395 = vmatpush1.msra.mxu0 0.0
      %396 = vmatprep.subr.mxu0 0.0
      %397 = vmatpush1.msra.mxu0 0.0
      %398 = vmatprep.subr.mxu0 0.0
      %399 = vmatpush1.msra.mxu0 0.0
      %400 = vmatprep.subr.mxu0 0.0
      %401 = vmatpush1.msra.mxu0 0.0
      %402 = vmatprep.subr.mxu0 0.0
      %403 = vmatpush1.msra.mxu0 0.0
      %404 = vmatprep.subr.mxu0 0.0
      %405 = vmatpush1.msra.mxu0 0.0
      %406 = vmatprep.subr.mxu0 0.0
      %407 = vmatpush1.msra.mxu0 0.0
      %408 = vmatprep.subr.mxu0 0.0
      %409 = vmatpush1.msra.mxu0 0.0
      %410 = vmatprep.subr.mxu0 0.0
      %411 = vmatpush1.msra.mxu0 0.0
      %412 = vmatprep.subr.mxu0 0.0
      %413 = vmatpush1.msra.mxu0 0.0
      %414 = vmatprep.subr.mxu0 0.0
      %415 = vmatpush1.msra.mxu0 0.0
      %416 = vmatprep.subr.mxu0 0.0
      %417 = vmatpush1.msra.mxu0 0.0
      %418 = vmatprep.subr.mxu0 0.0
      %419 = vmatpush1.msra.mxu0 0.0
      %420 = vmatprep.subr.mxu0 0.0
      %421 = vmatpush1.msra.mxu0 %v390
      %422 = vmatprep.subr.mxu0 0.0
      %423 = vmatpush1.msra.mxu0 %v264
      %424 = vmatprep.subr.mxu0 0.0
      %425 = vmatpush2.msra.mxu0 0.0
      %426 = vmatprep.subr.mxu0 0.0
      %427 = vmatpush2.msra.mxu0 0.0
      %428 = vmatprep.subr.mxu0 0.0
      %429 = vmatpush2.msra.mxu0 0.0
      %430 = vmatprep.subr.mxu0 0.0
      %431 = vmatpush2.msra.mxu0 0.0
      %432 = vmatprep.subr.mxu0 0.0
      %433 = vmatpush2.msra.mxu0 0.0
      %434 = vmatprep.subr.mxu0 0.0
      %435 = vmatpush2.msra.mxu0 0.0
      %436 = vmatprep.subr.mxu0 0.0
      %437 = vmatpush2.msra.mxu0 0.0
      %438 = vmatprep.subr.mxu0 0.0
      %439 = vmatpush2.msra.mxu0 0.0
      %440 = vmatprep.subr.mxu0 0.0
      %441 = vmatpush2.msra.mxu0 0.0
      %442 = vmatprep.subr.mxu0 0.0
      %443 = vmatpush2.msra.mxu0 0.0
      %444 = vmatprep.subr.mxu0 0.0
      %445 = vmatpush2.msra.mxu0 0.0
      %446 = vmatprep.subr.mxu0 0.0
      %447 = vmatpush2.msra.mxu0 0.0
      %448 = vmatprep.subr.mxu0 0.0
      %449 = vmatpush2.msra.mxu0 0.0
      %450 = vmatprep.subr.mxu0 0.0
      %451 = vmatpush2.msra.mxu0 0.0
      %452 = vmatprep.subr.mxu0 0.0
      %453 = vmatpush2.msra.mxu0 0.0
      %454 = vmatprep.subr.mxu0 0.0
      %455 = vmatpush2.msra.mxu0 0.0
      %456 = vmatprep.mubr.f32.mxu0 0.0
      %457 = vmatmul.mubr.f32.gmra.mxu0 %v383
      %v458 = vpop.f32.mrf.mxu0
      %v459 = vadd.f32 %v380, %v458
      %v460 = vpop.f32.mrf.mxu0
      %461 = vmatprep.mubr.f32.mxu0 0.0
      %462 = vmatmul.mubr.f32.gmra.mxu0 %v386
      %v463 = vpop.f32.mrf.mxu0
      %v464 = vadd.f32 %v381, %v463
      %v465 = vpop.f32.mrf.mxu0
      %466 = vdwg.mxu0
      %467 = vst.msk [vmem:[%s257] sm:$0xff] %vm266, %v459
      %vm468 = vcmask 35840
      %469 = vst.msk [vmem:[%s257 + $0x8] sm:$0xf] %vm468, %v464
      %p470 = scmp.lt.s32.totalorder %s15, 1
      %s471 = scalar_select %p470, %s15, 1
      %s472 = smul.addr %s471, 2
      %s473 = smul.addr %s472, 8
      %s474 = scalar_lea.vmem %s4, %s473
      // Predicated region
      $region37: #{tpu_custom_call.1} parent=35 // pred_check
        %p475 = pneg %p137
      $region38: #{tpu_custom_call.1} parent=35 // pred_check_branch
        %477 = sbr.rel (%p475) target = $region40
      $region39: #{tpu_custom_call.1} parent=35 // pred_region
        _
      $region40: #{tpu_custom_call.1} parent=35 // pred_fallthru
        _
    $region36: #{tpu_custom_call.1} parent=5 // pred_fallthru
      _
    %p478 = scmp.le.s32.totalorder 2, %s10
    // Predicated region
    $region41: #{tpu_custom_call.1} parent=5 // pred_check
      %p479 = pneg %p478
    $region42: #{tpu_custom_call.1} parent=5 // pred_check_branch
      %481 = sbr.rel (%p479) target = $region44
    $region43: #{tpu_custom_call.1} parent=5 // pred_region
      %s482 = ssub.s32 %s10, 2
      // Predicated region
      $region45: #{tpu_custom_call.1} parent=43 // pred_check
        %p483 = pneg %p143
      $region46: #{tpu_custom_call.1} parent=43 // pred_check_branch
        %485 = sbr.rel (%p483) target = $region48
      $region47: #{tpu_custom_call.1} parent=43 // pred_region
        %p486 = scmp.lt.s32.totalorder %s16, 1
        %s487 = scalar_select %p486, %s16, 1
        %s488 = smul.addr %s487, 2
        %s489 = smul.addr %s488, 8
        %s490 = scalar_lea.vmem %s4, %s489
      $region48: #{tpu_custom_call.1} parent=43 // pred_fallthru
        _
    $region44: #{tpu_custom_call.1} parent=5 // pred_fallthru
      _
  $region6: #{tpu_custom_call.1} parent=0 // loop_footer
    %s14 = sadd.s32 1, %s10
  $region7: #{tpu_custom_call.1} parent=0 // loop_footer_branch
    %9 = sbr.rel target = $region3
  $region8: #{tpu_custom_call.1} parent=0 // loop_exit
    _

</llo_original>
